<compile_context>
chip_gen: v6e
topology: v6e:2x2x1
jax: 0.10.0
libtpu: 0.0.40
codegen_flags: <defaults>
</compile_context>

<pallas_src>
import math
import numpy as np
import jax
import jax.numpy as jnp
from jax import lax
from jax.experimental import pallas as pl
from jax.experimental.pallas import tpu as pltpu  # noqa: F401  (TPU backend)

# ---- model config (args.*) ----
B = 2                 # batch
T = 16                # sequence length (word embeddings)
D_MODEL = 32          # args.d_model
CO = 16               # args.kernel_num
KS = (3, 4, 5)        # args.kernel_sizes
TRG_VOCAB = 50        # args.trg_vocab (self.out is unused in forward)

NK = len(KS)
NKCO = NK * CO                    # 48 packed conv output channels
KMAX = max(KS)
T_OUT = T - min(KS) + 1           # 14: longest valid conv output length
T_PAD = T_OUT + KMAX - 1          # 18: per-example zero-padded length
ROWS = B * T_PAD                  # 36: all batch rows laid out contiguously
Y_ROWS = ROWS - KMAX + 1          # 32: rows of the fused conv output


# ---------------------------------------------------------------------------
# Pallas kernel: entire ConvCritic forward, whole batch, one invocation.
# ---------------------------------------------------------------------------
def convcritic_kernel(x_ref, cw_ref, cb_ref, msk_ref,
                      w1_ref, b1_ref, w2_ref, b2_ref, o_ref):
    # x_ref: (B*T_PAD, D) zero-padded, batch-flattened embeddings.
    x = x_ref[...]

    # Conv1d (valid) over every kernel size at once: KMAX shifted matmuls
    # against a (D, NK*CO) weight slab (taps beyond a branch's K are zero).
    acc = jnp.zeros((Y_ROWS, NKCO), jnp.float32)
    for k in range(KMAX):                                  # static unroll
        acc = acc + jnp.dot(x[k:k + Y_ROWS, :], cw_ref[k],
                            preferred_element_type=jnp.float32)

    # bias + ReLU, then zero out rows that are not valid conv outputs
    act = jnp.maximum(acc + cb_ref[...], 0.0) * msk_ref[...]

    # Global max-pool over time, per batch element (masked rows are 0 and the
    # ReLU output is >= 0, so they never win). -> (B, NK*CO)
    feat = jnp.concatenate(
        [jnp.max(act[b * T_PAD:b * T_PAD + T_OUT, :], axis=0, keepdims=True)
         for b in range(B)], axis=0)

    # MLP: Linear -> ReLU -> Linear -> Sigmoid
    h = jnp.maximum(
        jnp.dot(feat, w1_ref[...], preferred_element_type=jnp.float32)
        + b1_ref[...], 0.0)                                # (B, D)
    z = jnp.dot(h, w2_ref[...], preferred_element_type=jnp.float32) + b2_ref[...]
    o_ref[...] = 1.0 / (1.0 + jnp.exp(-z))                 # (B, 1)


def conv_critic_forward(x, mask, params):
    # `mask` is unused by ConvCritic.forward; grad_reverse is identity here.
    # TODO(synk): GradReverse only flips gradients in backward; no forward op.
    del mask
    xpad = jnp.pad(x, ((0, 0), (0, T_PAD - T), (0, 0)))    # zero-pad time dim
    xflat = xpad.reshape(B * T_PAD, D_MODEL)               # batch along rows
    return pl.pallas_call(
        convcritic_kernel,
        out_shape=jax.ShapeDtypeStruct((B, 1), jnp.float32),
    )(xflat, params["conv_w"], params["conv_b"], params["time_mask"],
      params["w1t"], params["b1"], params["w2t"], params["b2"])


# ---------------------------------------------------------------------------
# Pure-JAX reference (mirrors the PyTorch module) for the correctness check.
# ---------------------------------------------------------------------------
def conv_critic_ref(x, params):
    xt = jnp.transpose(x, (0, 2, 1))                       # (B, D, T)
    feats = []
    for w, b in zip(params["conv_ws"], params["conv_bs"]):
        c = lax.conv_general_dilated(
            xt, w, window_strides=(1,), padding="VALID",
            dimension_numbers=("NCH", "OIH", "NCH"))       # (B, Co, T-K+1)
        c = jnp.maximum(c + b[None, :, None], 0.0)
        feats.append(jnp.max(c, axis=2))                   # (B, Co)
    feat = jnp.concatenate(feats, axis=1)                  # (B, NK*Co)
    h = jnp.maximum(feat @ params["mlp_w1"].T + params["mlp_b1"], 0.0)
    z = h @ params["mlp_w2"].T + params["mlp_b2"]
    return 1.0 / (1.0 + jnp.exp(-z))


# ---------------------------------------------------------------------------
# Deterministic parameter init (PyTorch-style layouts) + one-time packing.
# ---------------------------------------------------------------------------
def init_params(key):
    ks = jax.random.split(key, 2 * NK + 4)

    def uni(k, shape, fan_in):
        bound = 1.0 / math.sqrt(fan_in)
        return jax.random.uniform(k, shape, jnp.float32, -bound, bound)

    conv_ws, conv_bs = [], []
    for n, K in enumerate(KS):
        conv_ws.append(uni(ks[2 * n], (CO, D_MODEL, K), D_MODEL * K))
        conv_bs.append(uni(ks[2 * n + 1], (CO,), D_MODEL * K))
    mlp_w1 = uni(ks[2 * NK + 0], (D_MODEL, NKCO), NKCO)    # Linear(NK*Co, D)
    mlp_b1 = uni(ks[2 * NK + 1], (D_MODEL,), NKCO)
    mlp_w2 = uni(ks[2 * NK + 2], (1, D_MODEL), D_MODEL)    # Linear(D, 1)
    mlp_b2 = uni(ks[2 * NK + 3], (1,), D_MODEL)

    # ---- pack for the fused kernel (one-time parameter prep) ----
    conv_w = np.zeros((KMAX, D_MODEL, NKCO), np.float32)
    conv_b = np.zeros((1, NKCO), np.float32)
    for n, K in enumerate(KS):
        wn = np.asarray(conv_ws[n])                        # (Co, D, K)
        conv_w[:K, :, n * CO:(n + 1) * CO] = np.transpose(wn, (2, 1, 0))
        conv_b[0, n * CO:(n + 1) * CO] = np.asarray(conv_bs[n])

    # validity mask: global row b*T_PAD + t is a real output of branch n
    # iff t < T - K_n + 1
    time_mask = np.zeros((Y_ROWS, NKCO), np.float32)
    for n, K in enumerate(KS):
        L = T - K + 1
        for b in range(B):
            time_mask[b * T_PAD:b * T_PAD + L, n * CO:(n + 1) * CO] = 1.0

    return dict(
        # raw (torch-layout) params, used by the pure-JAX reference
        conv_ws=conv_ws, conv_bs=conv_bs,
        mlp_w1=mlp_w1, mlp_b1=mlp_b1, mlp_w2=mlp_w2, mlp_b2=mlp_b2,
        # packed params consumed by the Pallas kernel
        conv_w=jnp.asarray(conv_w), conv_b=jnp.asarray(conv_b),
        time_mask=jnp.asarray(time_mask),
        w1t=mlp_w1.T, b1=mlp_b1[None, :],
        w2t=mlp_w2.T, b2=mlp_b2[None, :],
    )


if __name__ == "__main__":
    root = jax.random.PRNGKey(0)
    k_x, k_m, k_p = jax.random.split(root, 3)

    x = jax.random.normal(k_x, (B, T, D_MODEL), jnp.float32)   # word embeddings
    mask = jnp.ones((B, T), jnp.float32)                       # unused by forward
    params = init_params(k_p)

    fwd = jax.jit(conv_critic_forward)
    out = jax.block_until_ready(fwd(x, mask, params))

    ref = jax.block_until_ready(conv_critic_ref(x, params))
    assert out.shape == (B, 1)
    assert jnp.allclose(out, ref, rtol=1e-4, atol=1e-4), "mismatch vs reference"

    print("KERNEL_OK")
</pallas_src>

<mosaic_0001>
module attributes {stable_mosaic.version = 11 : i64} {
  func.func @convcritic_kernel(%arg0: memref<36x32xf32, #tpu.memory_space<vmem>>, %arg1: memref<5x32x48xf32, #tpu.memory_space<vmem>>, %arg2: memref<1x48xf32, #tpu.memory_space<vmem>>, %arg3: memref<32x48xf32, #tpu.memory_space<vmem>>, %arg4: memref<48x32xf32, #tpu.memory_space<vmem>>, %arg5: memref<1x32xf32, #tpu.memory_space<vmem>>, %arg6: memref<32x1xf32, #tpu.memory_space<vmem>>, %arg7: memref<1x1xf32, #tpu.memory_space<vmem>>, %arg8: memref<2x1xf32, #tpu.memory_space<vmem>>) attributes {dimension_semantics = [], scalar_prefetch = 0 : i64, scratch_operands = 0 : i64, tpu.core_type = #tpu.core_type<tc>} {
    %c0 = arith.constant 0 : index
    %c0_0 = arith.constant 0 : index
    %0 = vector.load %arg0[%c0, %c0_0] : memref<36x32xf32, #tpu.memory_space<vmem>>, vector<36x32xf32>
    %cst = arith.constant 0.000000e+00 : f32
    %1 = vector.broadcast %cst : f32 to vector<32x48xf32>
    %2 = vector.extract_strided_slice %0 {offsets = [0, 0], sizes = [32, 32], strides = [1, 1]} : vector<36x32xf32> to vector<32x32xf32>
    %c0_1 = arith.constant 0 : index
    %c0_2 = arith.constant 0 : index
    %c0_3 = arith.constant 0 : index
    %3 = vector.load %arg1[%c0_1, %c0_2, %c0_3] : memref<5x32x48xf32, #tpu.memory_space<vmem>>, vector<1x32x48xf32>
    %4 = vector.shape_cast %3 : vector<1x32x48xf32> to vector<32x48xf32>
    %cst_4 = arith.constant dense<0.000000e+00> : vector<32x48xf32>
    %5 = tpu.matmul %2, %4, %cst_4 {dimension_numbers = #tpu.dot_dimension_numbers<[1], [0], [0], [1], [0, 0, 1, 1], [], []>} : vector<32x32xf32>, vector<32x48xf32>, vector<32x48xf32> -> vector<32x48xf32>
    %6 = arith.addf %1, %5 : vector<32x48xf32>
    %7 = vector.extract_strided_slice %0 {offsets = [1, 0], sizes = [32, 32], strides = [1, 1]} : vector<36x32xf32> to vector<32x32xf32>
    %c1 = arith.constant 1 : index
    %c0_5 = arith.constant 0 : index
    %c0_6 = arith.constant 0 : index
    %8 = vector.load %arg1[%c1, %c0_5, %c0_6] : memref<5x32x48xf32, #tpu.memory_space<vmem>>, vector<1x32x48xf32>
    %9 = vector.shape_cast %8 : vector<1x32x48xf32> to vector<32x48xf32>
    %cst_7 = arith.constant dense<0.000000e+00> : vector<32x48xf32>
    %10 = tpu.matmul %7, %9, %cst_7 {dimension_numbers = #tpu.dot_dimension_numbers<[1], [0], [0], [1], [0, 0, 1, 1], [], []>} : vector<32x32xf32>, vector<32x48xf32>, vector<32x48xf32> -> vector<32x48xf32>
    %11 = arith.addf %6, %10 : vector<32x48xf32>
    %12 = vector.extract_strided_slice %0 {offsets = [2, 0], sizes = [32, 32], strides = [1, 1]} : vector<36x32xf32> to vector<32x32xf32>
    %c2 = arith.constant 2 : index
    %c0_8 = arith.constant 0 : index
    %c0_9 = arith.constant 0 : index
    %13 = vector.load %arg1[%c2, %c0_8, %c0_9] : memref<5x32x48xf32, #tpu.memory_space<vmem>>, vector<1x32x48xf32>
    %14 = vector.shape_cast %13 : vector<1x32x48xf32> to vector<32x48xf32>
    %cst_10 = arith.constant dense<0.000000e+00> : vector<32x48xf32>
    %15 = tpu.matmul %12, %14, %cst_10 {dimension_numbers = #tpu.dot_dimension_numbers<[1], [0], [0], [1], [0, 0, 1, 1], [], []>} : vector<32x32xf32>, vector<32x48xf32>, vector<32x48xf32> -> vector<32x48xf32>
    %16 = arith.addf %11, %15 : vector<32x48xf32>
    %17 = vector.extract_strided_slice %0 {offsets = [3, 0], sizes = [32, 32], strides = [1, 1]} : vector<36x32xf32> to vector<32x32xf32>
    %c3 = arith.constant 3 : index
    %c0_11 = arith.constant 0 : index
    %c0_12 = arith.constant 0 : index
    %18 = vector.load %arg1[%c3, %c0_11, %c0_12] : memref<5x32x48xf32, #tpu.memory_space<vmem>>, vector<1x32x48xf32>
    %19 = vector.shape_cast %18 : vector<1x32x48xf32> to vector<32x48xf32>
    %cst_13 = arith.constant dense<0.000000e+00> : vector<32x48xf32>
    %20 = tpu.matmul %17, %19, %cst_13 {dimension_numbers = #tpu.dot_dimension_numbers<[1], [0], [0], [1], [0, 0, 1, 1], [], []>} : vector<32x32xf32>, vector<32x48xf32>, vector<32x48xf32> -> vector<32x48xf32>
    %21 = arith.addf %16, %20 : vector<32x48xf32>
    %22 = vector.extract_strided_slice %0 {offsets = [4, 0], sizes = [32, 32], strides = [1, 1]} : vector<36x32xf32> to vector<32x32xf32>
    %c4 = arith.constant 4 : index
    %c0_14 = arith.constant 0 : index
    %c0_15 = arith.constant 0 : index
    %23 = vector.load %arg1[%c4, %c0_14, %c0_15] : memref<5x32x48xf32, #tpu.memory_space<vmem>>, vector<1x32x48xf32>
    %24 = vector.shape_cast %23 : vector<1x32x48xf32> to vector<32x48xf32>
    %cst_16 = arith.constant dense<0.000000e+00> : vector<32x48xf32>
    %25 = tpu.matmul %22, %24, %cst_16 {dimension_numbers = #tpu.dot_dimension_numbers<[1], [0], [0], [1], [0, 0, 1, 1], [], []>} : vector<32x32xf32>, vector<32x48xf32>, vector<32x48xf32> -> vector<32x48xf32>
    %26 = arith.addf %21, %25 : vector<32x48xf32>
    %c0_17 = arith.constant 0 : index
    %c0_18 = arith.constant 0 : index
    %27 = vector.load %arg2[%c0_17, %c0_18] : memref<1x48xf32, #tpu.memory_space<vmem>>, vector<1x48xf32>
    %28 = vector.broadcast %27 : vector<1x48xf32> to vector<32x48xf32>
    %29 = arith.addf %26, %28 : vector<32x48xf32>
    %cst_19 = arith.constant 0.000000e+00 : f32
    %30 = vector.broadcast %cst_19 : f32 to vector<32x48xf32>
    %31 = arith.maximumf %29, %30 : vector<32x48xf32>
    %c0_20 = arith.constant 0 : index
    %c0_21 = arith.constant 0 : index
    %32 = vector.load %arg3[%c0_20, %c0_21] : memref<32x48xf32, #tpu.memory_space<vmem>>, vector<32x48xf32>
    %33 = arith.mulf %31, %32 : vector<32x48xf32>
    %34 = vector.extract_strided_slice %33 {offsets = [0, 0], sizes = [14, 48], strides = [1, 1]} : vector<32x48xf32> to vector<14x48xf32>
    %cst_22 = arith.constant dense<0xFF800000> : vector<48xf32>
    %35 = vector.multi_reduction <maximumf>, %34, %cst_22 [0] : vector<14x48xf32> to vector<48xf32>
    %36 = vector.shape_cast %35 : vector<48xf32> to vector<1x48xf32>
    %37 = vector.extract_strided_slice %33 {offsets = [18, 0], sizes = [14, 48], strides = [1, 1]} : vector<32x48xf32> to vector<14x48xf32>
    %cst_23 = arith.constant dense<0xFF800000> : vector<48xf32>
    %38 = vector.multi_reduction <maximumf>, %37, %cst_23 [0] : vector<14x48xf32> to vector<48xf32>
    %39 = vector.shape_cast %38 : vector<48xf32> to vector<1x48xf32>
    %40 = tpu.concatenate %36, %39 in 0 : vector<1x48xf32>, vector<1x48xf32> -> vector<2x48xf32>
    %c0_24 = arith.constant 0 : index
    %c0_25 = arith.constant 0 : index
    %41 = vector.load %arg4[%c0_24, %c0_25] : memref<48x32xf32, #tpu.memory_space<vmem>>, vector<48x32xf32>
    %cst_26 = arith.constant dense<0.000000e+00> : vector<2x32xf32>
    %42 = tpu.matmul %40, %41, %cst_26 {dimension_numbers = #tpu.dot_dimension_numbers<[1], [0], [0], [1], [0, 0, 1, 1], [], []>} : vector<2x48xf32>, vector<48x32xf32>, vector<2x32xf32> -> vector<2x32xf32>
    %c0_27 = arith.constant 0 : index
    %c0_28 = arith.constant 0 : index
    %43 = vector.load %arg5[%c0_27, %c0_28] : memref<1x32xf32, #tpu.memory_space<vmem>>, vector<1x32xf32>
    %44 = vector.broadcast %43 : vector<1x32xf32> to vector<2x32xf32>
    %45 = arith.addf %42, %44 : vector<2x32xf32>
    %cst_29 = arith.constant 0.000000e+00 : f32
    %46 = vector.broadcast %cst_29 : f32 to vector<2x32xf32>
    %47 = arith.maximumf %45, %46 : vector<2x32xf32>
    %c0_30 = arith.constant 0 : index
    %c0_31 = arith.constant 0 : index
    %48 = vector.load %arg6[%c0_30, %c0_31] : memref<32x1xf32, #tpu.memory_space<vmem>>, vector<32x1xf32>
    %cst_32 = arith.constant dense<0.000000e+00> : vector<2x1xf32>
    %49 = tpu.matmul %47, %48, %cst_32 {dimension_numbers = #tpu.dot_dimension_numbers<[1], [0], [0], [1], [0, 0, 1, 1], [], []>} : vector<2x32xf32>, vector<32x1xf32>, vector<2x1xf32> -> vector<2x1xf32>
    %c0_33 = arith.constant 0 : index
    %c0_34 = arith.constant 0 : index
    %50 = vector.load %arg7[%c0_33, %c0_34] : memref<1x1xf32, #tpu.memory_space<vmem>>, vector<1x1xf32>
    %51 = vector.broadcast %50 : vector<1x1xf32> to vector<2x1xf32>
    %52 = arith.addf %49, %51 : vector<2x1xf32>
    %cst_35 = arith.constant 0.000000e+00 : f32
    %53 = vector.broadcast %cst_35 : f32 to vector<2x1xf32>
    %54 = arith.subf %53, %52 : vector<2x1xf32>
    %55 = math.exp %54 : vector<2x1xf32>
    %cst_36 = arith.constant 1.000000e+00 : f32
    %56 = vector.broadcast %cst_36 : f32 to vector<2x1xf32>
    %57 = arith.addf %56, %55 : vector<2x1xf32>
    %cst_37 = arith.constant 1.000000e+00 : f32
    %58 = vector.broadcast %cst_37 : f32 to vector<2x1xf32>
    %59 = arith.divf %58, %57 : vector<2x1xf32>
    %c0_38 = arith.constant 0 : index
    %c0_39 = arith.constant 0 : index
    %60 = vector.load %arg8[%c0_38, %c0_39] : memref<2x1xf32, #tpu.memory_space<vmem>>, vector<2x1xf32>
    tpu.vector_store %arg8[%c0_38, %c0_39], %59 {strides = array<i32>} : memref<2x1xf32, #tpu.memory_space<vmem>>, vector<2x1xf32>,
    return
  }
}

</mosaic_0001>

<llo_original>
// kernel: conv_critic_forward.1
$region0: #{conv_critic_forward.1}
  #allocation0 [shape = 'u32[]', space=smem, size = 0x4, offset = 0x4, fixed_abs, tag = 'smem constant byte address 0x4 - core index']
  #allocation1 [shape = 'u32[144,128]{1,0:T(1,128)}', space=vmem, size = 0x12000, scoped, tag = 'internal scratch']
  #allocation2 [shape = 'f32[1,1]{1,0:T(1,128)S(1)}', space=vmem, size = 0x200, scoped, tag = 'scoped memory for conv_critic_forward.1']
  %s0 = inlined_call_operand.vmem [shape: f32[36,32], index: 0, kind: input, shape index: {}]
  %s1 = inlined_call_operand.vmem [shape: f32[5,32,48], index: 1, kind: input, shape index: {}]
  %s2 = inlined_call_operand.vmem [shape: f32[1,48], index: 2, kind: input, shape index: {}]
  %s3 = inlined_call_operand.vmem [shape: f32[32,48], index: 3, kind: input, shape index: {}]
  %s4 = inlined_call_operand.vmem [shape: f32[48,32], index: 4, kind: input, shape index: {}]
  %s5 = inlined_call_operand.vmem [shape: f32[1,32], index: 5, kind: input, shape index: {}]
  %s6 = inlined_call_operand.vmem [shape: f32[32,1], index: 6, kind: input, shape index: {}]
  %s7 = inlined_call_operand.<no memory space> [shape: f32[1,1], index: 7, kind: input, shape index: {}]
  %s8 = inlined_call_operand.vmem [shape: f32[2,1], index: 8, kind: output, shape index: {}]
  %s9 = sld [smem:[#allocation0]]
  $region42: #{conv_critic_forward.1} parent=0
    _
  %s11 = ssub.s32 1, %s9
  %s12 = scalar_select 0, %s11, %s9
  %v13 = vstv %s7
  %14 = vst [vmem:[#allocation2] sm:$0x1] %v13
  // Predicated region
  $region2: #{conv_critic_forward.1} parent=0 // pred_check
    _
  $region3: #{conv_critic_forward.1} parent=0 // pred_check_branch
    %16 = sbr.rel (0) target = $region5
  $region4: #{conv_critic_forward.1} parent=0 // pred_region
    _
  $region5: #{conv_critic_forward.1} parent=0 // pred_fallthru
    _
  // Predicated region
  $region6: #{conv_critic_forward.1} parent=0 // pred_check
    _
  $region7: #{conv_critic_forward.1} parent=0 // pred_check_branch
    %18 = sbr.rel (0) target = $region9
  $region8: #{conv_critic_forward.1} parent=0 // pred_region
    _
  $region9: #{conv_critic_forward.1} parent=0 // pred_fallthru
    _
  // Predicated region
  $region10: #{conv_critic_forward.1} parent=0 // pred_check
    _
  $region11: #{conv_critic_forward.1} parent=0 // pred_check_branch
    %20 = sbr.rel (0) target = $region13
  $region12: #{conv_critic_forward.1} parent=0 // pred_region
    _
  $region13: #{conv_critic_forward.1} parent=0 // pred_fallthru
    _
  // Predicated region
  $region14: #{conv_critic_forward.1} parent=0 // pred_check
    _
  $region15: #{conv_critic_forward.1} parent=0 // pred_check_branch
    %22 = sbr.rel (0) target = $region17
  $region16: #{conv_critic_forward.1} parent=0 // pred_region
    _
  $region17: #{conv_critic_forward.1} parent=0 // pred_fallthru
    _
  // Predicated region
  $region18: #{conv_critic_forward.1} parent=0 // pred_check
    _
  $region19: #{conv_critic_forward.1} parent=0 // pred_check_branch
    %24 = sbr.rel (0) target = $region21
  $region20: #{conv_critic_forward.1} parent=0 // pred_region
    _
  $region21: #{conv_critic_forward.1} parent=0 // pred_fallthru
    _
  // Predicated region
  $region22: #{conv_critic_forward.1} parent=0 // pred_check
    _
  $region23: #{conv_critic_forward.1} parent=0 // pred_check_branch
    %26 = sbr.rel (0) target = $region25
  $region24: #{conv_critic_forward.1} parent=0 // pred_region
    _
  $region25: #{conv_critic_forward.1} parent=0 // pred_fallthru
    _
  // Predicated region
  $region26: #{conv_critic_forward.1} parent=0 // pred_check
    _
  $region27: #{conv_critic_forward.1} parent=0 // pred_check_branch
    %28 = sbr.rel (0) target = $region29
  $region28: #{conv_critic_forward.1} parent=0 // pred_region
    _
  $region29: #{conv_critic_forward.1} parent=0 // pred_fallthru
    _
  // Predicated region
  $region30: #{conv_critic_forward.1} parent=0 // pred_check
    _
  $region31: #{conv_critic_forward.1} parent=0 // pred_check_branch
    %30 = sbr.rel (0) target = $region33
  $region32: #{conv_critic_forward.1} parent=0 // pred_region
    _
  $region33: #{conv_critic_forward.1} parent=0 // pred_fallthru
    _
  %v31 = vld [vmem:[%s0] sm:$0xff]
  %v32 = vld [vmem:[%s0 + $0x8] sm:$0xff]
  %v33 = vld [vmem:[%s0 + $0x10] sm:$0xff]
  %v34 = vld [vmem:[%s0 + $0x18] sm:$0xff]
  %v35 = vld [vmem:[%s0 + $0x20] sm:$0xf]
  %v36 = vld [vmem:[%s1] sm:$0xff]
  %v37 = vld [vmem:[%s1 + $0x8] sm:$0xff]
  %v38 = vld [vmem:[%s1 + $0x10] sm:$0xff]
  %v39 = vld [vmem:[%s1 + $0x18] sm:$0xff]
  %s40 = scalar_lea.vmem %s1, 32
  %v41 = vld [vmem:[%s40] sm:$0xff]
  %v42 = vld [vmem:[%s40 + $0x8] sm:$0xff]
  %v43 = vld [vmem:[%s40 + $0x10] sm:$0xff]
  %v44 = vld [vmem:[%s40 + $0x18] sm:$0xff]
  %vm50 = vcmask 1046528
  %v51 = vrot.slane %v31, 1
  %v52 = vrot.slane %v32, 1
  %v53 = vsel %vm50, %v51, %v52
  %v54 = vrot.slane %v33, 1
  %v55 = vsel %vm50, %v52, %v54
  %v56 = vrot.slane %v34, 1
  %v57 = vsel %vm50, %v54, %v56
  %v58 = vrot.slane %v35, 1
  %v59 = vsel %vm50, %v56, %v58
  %vm60 = vcmask 261120
  %v61 = vsel %vm60, %v53, 0
  %v63 = vsel %vm60, %v55, 0
  %v65 = vsel %vm60, %v57, 0
  %v67 = vsel %vm60, %v59, 0
  %69 = vmatprep.subr.mxu0 0.0
  %70 = vmatpush1.msra.mxu0 0.0
  %71 = vmatprep.subr.mxu0 0.0
  %72 = vmatpush1.msra.mxu0 0.0
  %73 = vmatprep.subr.mxu0 0.0
  %74 = vmatpush1.msra.mxu0 0.0
  %75 = vmatprep.subr.mxu0 0.0
  %76 = vmatpush1.msra.mxu0 0.0
  %77 = vmatprep.subr.mxu0 0.0
  %78 = vmatpush1.msra.mxu0 0.0
  %79 = vmatprep.subr.mxu0 0.0
  %80 = vmatpush1.msra.mxu0 0.0
  %81 = vmatprep.subr.mxu0 0.0
  %82 = vmatpush1.msra.mxu0 0.0
  %83 = vmatprep.subr.mxu0 0.0
  %84 = vmatpush1.msra.mxu0 0.0
  %85 = vmatprep.subr.mxu0 0.0
  %86 = vmatpush1.msra.mxu0 0.0
  %87 = vmatprep.subr.mxu0 0.0
  %88 = vmatpush1.msra.mxu0 0.0
  %89 = vmatprep.subr.mxu0 0.0
  %90 = vmatpush1.msra.mxu0 0.0
  %91 = vmatprep.subr.mxu0 0.0
  %92 = vmatpush1.msra.mxu0 0.0
  %93 = vmatprep.subr.mxu0 0.0
  %94 = vmatpush1.msra.mxu0 %v44
  %95 = vmatprep.subr.mxu0 0.0
  %96 = vmatpush1.msra.mxu0 %v43
  %97 = vmatprep.subr.mxu0 0.0
  %98 = vmatpush1.msra.mxu0 %v42
  %99 = vmatprep.subr.mxu0 0.0
  %100 = vmatpush1.msra.mxu0 %v41
  %101 = vmatprep.subr.mxu0 0.0
  %102 = vmatpush2.msra.mxu0 0.0
  %103 = vmatprep.subr.mxu0 0.0
  %104 = vmatpush2.msra.mxu0 0.0
  %105 = vmatprep.subr.mxu0 0.0
  %106 = vmatpush2.msra.mxu0 0.0
  %107 = vmatprep.subr.mxu0 0.0
  %108 = vmatpush2.msra.mxu0 0.0
  %109 = vmatprep.subr.mxu0 0.0
  %110 = vmatpush2.msra.mxu0 0.0
  %111 = vmatprep.subr.mxu0 0.0
  %112 = vmatpush2.msra.mxu0 0.0
  %113 = vmatprep.subr.mxu0 0.0
  %114 = vmatpush2.msra.mxu0 0.0
  %115 = vmatprep.subr.mxu0 0.0
  %116 = vmatpush2.msra.mxu0 0.0
  %117 = vmatprep.subr.mxu0 0.0
  %118 = vmatpush2.msra.mxu0 0.0
  %119 = vmatprep.subr.mxu0 0.0
  %120 = vmatpush2.msra.mxu0 0.0
  %121 = vmatprep.subr.mxu0 0.0
  %122 = vmatpush2.msra.mxu0 0.0
  %123 = vmatprep.subr.mxu0 0.0
  %124 = vmatpush2.msra.mxu0 0.0
  %125 = vmatprep.subr.mxu0 0.0
  %126 = vmatpush2.msra.mxu0 0.0
  %127 = vmatprep.subr.mxu0 0.0
  %128 = vmatpush2.msra.mxu0 0.0
  %129 = vmatprep.subr.mxu0 0.0
  %130 = vmatpush2.msra.mxu0 0.0
  %131 = vmatprep.subr.mxu0 0.0
  %132 = vmatpush2.msra.mxu0 0.0
  %133 = vmatprep.mubr.f32.mxu0 0.0
  %134 = vmatmul.mubr.f32.gmra.mxu0 %v61
  %v135 = vpop.f32.mrf.mxu0
  %v136 = vadd.f32 0.0, %v135
  %v137 = vpop.f32.mrf.mxu0
  %138 = vmatprep.mubr.f32.mxu0 0.0
  %139 = vmatmul.mubr.f32.gmra.mxu0 %v63
  %v140 = vpop.f32.mrf.mxu0
  %v141 = vadd.f32 0.0, %v140
  %v142 = vpop.f32.mrf.mxu0
  %143 = vmatprep.mubr.f32.mxu0 0.0
  %144 = vmatmul.mubr.f32.gmra.mxu0 %v65
  %v145 = vpop.f32.mrf.mxu0
  %v146 = vadd.f32 0.0, %v145
  %v147 = vpop.f32.mrf.mxu0
  %148 = vmatprep.mubr.f32.mxu0 0.0
  %149 = vmatmul.mubr.f32.gmra.mxu0 %v67
  %v150 = vpop.f32.mrf.mxu0
  %v151 = vadd.f32 0.0, %v150
  %v152 = vpop.f32.mrf.mxu0
  %153 = vdwg.mxu0
  %v154 = vsel %vm60, %v31, 0
  %v156 = vsel %vm60, %v32, 0
  %v158 = vsel %vm60, %v33, 0
  %v160 = vsel %vm60, %v34, 0
  %162 = vmatprep.subr.mxu0 0.0
  %163 = vmatpush1.msra.mxu0 0.0
  %164 = vmatprep.subr.mxu0 0.0
  %165 = vmatpush1.msra.mxu0 0.0
  %166 = vmatprep.subr.mxu0 0.0
  %167 = vmatpush1.msra.mxu0 0.0
  %168 = vmatprep.subr.mxu0 0.0
  %169 = vmatpush1.msra.mxu0 0.0
  %170 = vmatprep.subr.mxu0 0.0
  %171 = vmatpush1.msra.mxu0 0.0
  %172 = vmatprep.subr.mxu0 0.0
  %173 = vmatpush1.msra.mxu0 0.0
  %174 = vmatprep.subr.mxu0 0.0
  %175 = vmatpush1.msra.mxu0 0.0
  %176 = vmatprep.subr.mxu0 0.0
  %177 = vmatpush1.msra.mxu0 0.0
  %178 = vmatprep.subr.mxu0 0.0
  %179 = vmatpush1.msra.mxu0 0.0
  %180 = vmatprep.subr.mxu0 0.0
  %181 = vmatpush1.msra.mxu0 0.0
  %182 = vmatprep.subr.mxu0 0.0
  %183 = vmatpush1.msra.mxu0 0.0
  %184 = vmatprep.subr.mxu0 0.0
  %185 = vmatpush1.msra.mxu0 0.0
  %186 = vmatprep.subr.mxu0 0.0
  %187 = vmatpush1.msra.mxu0 %v39
  %188 = vmatprep.subr.mxu0 0.0
  %189 = vmatpush1.msra.mxu0 %v38
  %190 = vmatprep.subr.mxu0 0.0
  %191 = vmatpush1.msra.mxu0 %v37
  %192 = vmatprep.subr.mxu0 0.0
  %193 = vmatpush1.msra.mxu0 %v36
  %194 = vmatprep.subr.mxu0 0.0
  %195 = vmatpush2.msra.mxu0 0.0
  %196 = vmatprep.subr.mxu0 0.0
  %197 = vmatpush2.msra.mxu0 0.0
  %198 = vmatprep.subr.mxu0 0.0
  %199 = vmatpush2.msra.mxu0 0.0
  %200 = vmatprep.subr.mxu0 0.0
  %201 = vmatpush2.msra.mxu0 0.0
  %202 = vmatprep.subr.mxu0 0.0
  %203 = vmatpush2.msra.mxu0 0.0
  %204 = vmatprep.subr.mxu0 0.0
  %205 = vmatpush2.msra.mxu0 0.0
  %206 = vmatprep.subr.mxu0 0.0
  %207 = vmatpush2.msra.mxu0 0.0
  %208 = vmatprep.subr.mxu0 0.0
  %209 = vmatpush2.msra.mxu0 0.0
  %210 = vmatprep.subr.mxu0 0.0
  %211 = vmatpush2.msra.mxu0 0.0
  %212 = vmatprep.subr.mxu0 0.0
  %213 = vmatpush2.msra.mxu0 0.0
  %214 = vmatprep.subr.mxu0 0.0
  %215 = vmatpush2.msra.mxu0 0.0
  %216 = vmatprep.subr.mxu0 0.0
  %217 = vmatpush2.msra.mxu0 0.0
  %218 = vmatprep.subr.mxu0 0.0
  %219 = vmatpush2.msra.mxu0 0.0
  %220 = vmatprep.subr.mxu0 0.0
  %221 = vmatpush2.msra.mxu0 0.0
  %222 = vmatprep.subr.mxu0 0.0
  %223 = vmatpush2.msra.mxu0 0.0
  %224 = vmatprep.subr.mxu0 0.0
  %225 = vmatpush2.msra.mxu0 0.0
  %226 = vmatprep.mubr.f32.mxu0 0.0
  %227 = vmatmul.mubr.f32.gmra.mxu0 %v154
  %v228 = vpop.f32.mrf.mxu0
  %v229 = vadd.f32 %v136, %v228
  %v230 = vpop.f32.mrf.mxu0
  %231 = vmatprep.mubr.f32.mxu0 0.0
  %232 = vmatmul.mubr.f32.gmra.mxu0 %v156
  %v233 = vpop.f32.mrf.mxu0
  %v234 = vadd.f32 %v141, %v233
  %v235 = vpop.f32.mrf.mxu0
  %236 = vmatprep.mubr.f32.mxu0 0.0
  %237 = vmatmul.mubr.f32.gmra.mxu0 %v158
  %v238 = vpop.f32.mrf.mxu0
  %v239 = vadd.f32 %v146, %v238
  %v240 = vpop.f32.mrf.mxu0
  %241 = vmatprep.mubr.f32.mxu0 0.0
  %242 = vmatmul.mubr.f32.gmra.mxu0 %v160
  %v243 = vpop.f32.mrf.mxu0
  %v244 = vadd.f32 %v151, %v243
  %v245 = vpop.f32.mrf.mxu0
  %246 = vdwg.mxu0
  %s247 = scalar_lea.vmem %s1, 64
  %v248 = vld [vmem:[%s247] sm:$0xff]
  %v249 = vld [vmem:[%s247 + $0x8] sm:$0xff]
  %v250 = vld [vmem:[%s247 + $0x10] sm:$0xff]
  %v251 = vld [vmem:[%s247 + $0x18] sm:$0xff]
  %vm252 = vcmask 1045504
  %v253 = vrot.slane %v31, 2
  %v254 = vrot.slane %v32, 2
  %v255 = vsel %vm252, %v253, %v254
  %v256 = vrot.slane %v33, 2
  %v257 = vsel %vm252, %v254, %v256
  %v258 = vrot.slane %v34, 2
  %v259 = vsel %vm252, %v256, %v258
  %v260 = vrot.slane %v35, 2
  %v261 = vsel %vm252, %v258, %v260
  %v262 = vsel %vm60, %v255, 0
  %v264 = vsel %vm60, %v257, 0
  %v266 = vsel %vm60, %v259, 0
  %v268 = vsel %vm60, %v261, 0
  %270 = vmatprep.subr.mxu0 0.0
  %271 = vmatpush1.msra.mxu0 0.0
  %272 = vmatprep.subr.mxu0 0.0
  %273 = vmatpush1.msra.mxu0 0.0
  %274 = vmatprep.subr.mxu0 0.0
  %275 = vmatpush1.msra.mxu0 0.0
  %276 = vmatprep.subr.mxu0 0.0
  %277 = vmatpush1.msra.mxu0 0.0
  %278 = vmatprep.subr.mxu0 0.0
  %279 = vmatpush1.msra.mxu0 0.0
  %280 = vmatprep.subr.mxu0 0.0
  %281 = vmatpush1.msra.mxu0 0.0
  %282 = vmatprep.subr.mxu0 0.0
  %283 = vmatpush1.msra.mxu0 0.0
  %284 = vmatprep.subr.mxu0 0.0
  %285 = vmatpush1.msra.mxu0 0.0
  %286 = vmatprep.subr.mxu0 0.0
  %287 = vmatpush1.msra.mxu0 0.0
  %288 = vmatprep.subr.mxu0 0.0
  %289 = vmatpush1.msra.mxu0 0.0
  %290 = vmatprep.subr.mxu0 0.0
  %291 = vmatpush1.msra.mxu0 0.0
  %292 = vmatprep.subr.mxu0 0.0
  %293 = vmatpush1.msra.mxu0 0.0
  %294 = vmatprep.subr.mxu0 0.0
  %295 = vmatpush1.msra.mxu0 %v251
  %296 = vmatprep.subr.mxu0 0.0
  %297 = vmatpush1.msra.mxu0 %v250
  %298 = vmatprep.subr.mxu0 0.0
  %299 = vmatpush1.msra.mxu0 %v249
  %300 = vmatprep.subr.mxu0 0.0
  %301 = vmatpush1.msra.mxu0 %v248
  %302 = vmatprep.subr.mxu0 0.0
  %303 = vmatpush2.msra.mxu0 0.0
  %304 = vmatprep.subr.mxu0 0.0
  %305 = vmatpush2.msra.mxu0 0.0
  %306 = vmatprep.subr.mxu0 0.0
  %307 = vmatpush2.msra.mxu0 0.0
  %308 = vmatprep.subr.mxu0 0.0
  %309 = vmatpush2.msra.mxu0 0.0
  %310 = vmatprep.subr.mxu0 0.0
  %311 = vmatpush2.msra.mxu0 0.0
  %312 = vmatprep.subr.mxu0 0.0
  %313 = vmatpush2.msra.mxu0 0.0
  %314 = vmatprep.subr.mxu0 0.0
  %315 = vmatpush2.msra.mxu0 0.0
  %316 = vmatprep.subr.mxu0 0.0
  %317 = vmatpush2.msra.mxu0 0.0
  %318 = vmatprep.subr.mxu0 0.0
  %319 = vmatpush2.msra.mxu0 0.0
  %320 = vmatprep.subr.mxu0 0.0
  %321 = vmatpush2.msra.mxu0 0.0
  %322 = vmatprep.subr.mxu0 0.0
  %323 = vmatpush2.msra.mxu0 0.0
  %324 = vmatprep.subr.mxu0 0.0
  %325 = vmatpush2.msra.mxu0 0.0
  %326 = vmatprep.subr.mxu0 0.0
  %327 = vmatpush2.msra.mxu0 0.0
  %328 = vmatprep.subr.mxu0 0.0
  %329 = vmatpush2.msra.mxu0 0.0
  %330 = vmatprep.subr.mxu0 0.0
  %331 = vmatpush2.msra.mxu0 0.0
  %332 = vmatprep.subr.mxu0 0.0
  %333 = vmatpush2.msra.mxu0 0.0
  %334 = vmatprep.mubr.f32.mxu0 0.0
  %335 = vmatmul.mubr.f32.gmra.mxu0 %v262
  %v336 = vpop.f32.mrf.mxu0
  %v337 = vadd.f32 0.0, %v336
  %v338 = vpop.f32.mrf.mxu0
  %339 = vmatprep.mubr.f32.mxu0 0.0
  %340 = vmatmul.mubr.f32.gmra.mxu0 %v264
  %v341 = vpop.f32.mrf.mxu0
  %v342 = vadd.f32 0.0, %v341
  %v343 = vpop.f32.mrf.mxu0
  %344 = vmatprep.mubr.f32.mxu0 0.0
  %345 = vmatmul.mubr.f32.gmra.mxu0 %v266
  %v346 = vpop.f32.mrf.mxu0
  %v347 = vadd.f32 0.0, %v346
  %v348 = vpop.f32.mrf.mxu0
  %349 = vmatprep.mubr.f32.mxu0 0.0
  %350 = vmatmul.mubr.f32.gmra.mxu0 %v268
  %v351 = vpop.f32.mrf.mxu0
  %v352 = vadd.f32 0.0, %v351
  %v353 = vpop.f32.mrf.mxu0
  %354 = vdwg.mxu0
  %v355 = vadd.f32 %v229, %v337
  %v356 = vadd.f32 %v234, %v342
  %v357 = vadd.f32 %v239, %v347
  %v358 = vadd.f32 %v244, %v352
  %s359 = scalar_lea.vmem %s1, 96
  %v360 = vld [vmem:[%s359] sm:$0xff]
  %v361 = vld [vmem:[%s359 + $0x8] sm:$0xff]
  %v362 = vld [vmem:[%s359 + $0x10] sm:$0xff]
  %v363 = vld [vmem:[%s359 + $0x18] sm:$0xff]
  %vm364 = vcmask 1044480
  %v365 = vrot.slane %v31, 3
  %v366 = vrot.slane %v32, 3
  %v367 = vsel %vm364, %v365, %v366
  %v368 = vrot.slane %v33, 3
  %v369 = vsel %vm364, %v366, %v368
  %v370 = vrot.slane %v34, 3
  %v371 = vsel %vm364, %v368, %v370
  %v372 = vrot.slane %v35, 3
  %v373 = vsel %vm364, %v370, %v372
  %v374 = vsel %vm60, %v367, 0
  %v376 = vsel %vm60, %v369, 0
  %v378 = vsel %vm60, %v371, 0
  %v380 = vsel %vm60, %v373, 0
  %382 = vmatprep.subr.mxu0 0.0
  %383 = vmatpush1.msra.mxu0 0.0
  %384 = vmatprep.subr.mxu0 0.0
  %385 = vmatpush1.msra.mxu0 0.0
  %386 = vmatprep.subr.mxu0 0.0
  %387 = vmatpush1.msra.mxu0 0.0
  %388 = vmatprep.subr.mxu0 0.0
  %389 = vmatpush1.msra.mxu0 0.0
  %390 = vmatprep.subr.mxu0 0.0
  %391 = vmatpush1.msra.mxu0 0.0
  %392 = vmatprep.subr.mxu0 0.0
  %393 = vmatpush1.msra.mxu0 0.0
  %394 = vmatprep.subr.mxu0 0.0
  %395 = vmatpush1.msra.mxu0 0.0
  %396 = vmatprep.subr.mxu0 0.0
  %397 = vmatpush1.msra.mxu0 0.0
  %398 = vmatprep.subr.mxu0 0.0
  %399 = vmatpush1.msra.mxu0 0.0
  %400 = vmatprep.subr.mxu0 0.0
  %401 = vmatpush1.msra.mxu0 0.0
  %402 = vmatprep.subr.mxu0 0.0
  %403 = vmatpush1.msra.mxu0 0.0
  %404 = vmatprep.subr.mxu0 0.0
  %405 = vmatpush1.msra.mxu0 0.0
  %406 = vmatprep.subr.mxu0 0.0
  %407 = vmatpush1.msra.mxu0 %v363
  %408 = vmatprep.subr.mxu0 0.0
  %409 = vmatpush1.msra.mxu0 %v362
  %410 = vmatprep.subr.mxu0 0.0
  %411 = vmatpush1.msra.mxu0 %v361
  %412 = vmatprep.subr.mxu0 0.0
  %413 = vmatpush1.msra.mxu0 %v360
  %414 = vmatprep.subr.mxu0 0.0
  %415 = vmatpush2.msra.mxu0 0.0
  %416 = vmatprep.subr.mxu0 0.0
  %417 = vmatpush2.msra.mxu0 0.0
  %418 = vmatprep.subr.mxu0 0.0
  %419 = vmatpush2.msra.mxu0 0.0
  %420 = vmatprep.subr.mxu0 0.0
  %421 = vmatpush2.msra.mxu0 0.0
  %422 = vmatprep.subr.mxu0 0.0
  %423 = vmatpush2.msra.mxu0 0.0
  %424 = vmatprep.subr.mxu0 0.0
  %425 = vmatpush2.msra.mxu0 0.0
  %426 = vmatprep.subr.mxu0 0.0
  %427 = vmatpush2.msra.mxu0 0.0
  %428 = vmatprep.subr.mxu0 0.0
  %429 = vmatpush2.msra.mxu0 0.0
  %430 = vmatprep.subr.mxu0 0.0
  %431 = vmatpush2.msra.mxu0 0.0
  %432 = vmatprep.subr.mxu0 0.0
  %433 = vmatpush2.msra.mxu0 0.0
  %434 = vmatprep.subr.mxu0 0.0
  %435 = vmatpush2.msra.mxu0 0.0
  %436 = vmatprep.subr.mxu0 0.0
  %437 = vmatpush2.msra.mxu0 0.0
  %438 = vmatprep.subr.mxu0 0.0
  %439 = vmatpush2.msra.mxu0 0.0
  %440 = vmatprep.subr.mxu0 0.0
  %441 = vmatpush2.msra.mxu0 0.0
  %442 = vmatprep.subr.mxu0 0.0
  %443 = vmatpush2.msra.mxu0 0.0
  %444 = vmatprep.subr.mxu0 0.0
  %445 = vmatpush2.msra.mxu0 0.0
  %446 = vmatprep.mubr.f32.mxu0 0.0
  %447 = vmatmul.mubr.f32.gmra.mxu0 %v374
  %v448 = vpop.f32.mrf.mxu0
  %v449 = vadd.f32 0.0, %v448
  %v450 = vpop.f32.mrf.mxu0
  %451 = vmatprep.mubr.f32.mxu0 0.0
  %452 = vmatmul.mubr.f32.gmra.mxu0 %v376
  %v453 = vpop.f32.mrf.mxu0
  %v454 = vadd.f32 0.0, %v453
  %v455 = vpop.f32.mrf.mxu0
  %456 = vmatprep.mubr.f32.mxu0 0.0
  %457 = vmatmul.mubr.f32.gmra.mxu0 %v378
  %v458 = vpop.f32.mrf.mxu0
  %v459 = vadd.f32 0.0, %v458
  %v460 = vpop.f32.mrf.mxu0
  %461 = vmatprep.mubr.f32.mxu0 0.0
  %462 = vmatmul.mubr.f32.gmra.mxu0 %v380
  %v463 = vpop.f32.mrf.mxu0
  %v464 = vadd.f32 0.0, %v463
  %v465 = vpop.f32.mrf.mxu0
  %466 = vdwg.mxu0
  %v467 = vadd.f32 %v355, %v449
  %v468 = vadd.f32 %v356, %v454
  %v469 = vadd.f32 %v357, %v459
  %v470 = vadd.f32 %v358, %v464
  %s471 = scalar_lea.vmem %s1, 128
  %v472 = vld [vmem:[%s471] sm:$0xff]
  %v473 = vld [vmem:[%s471 + $0x8] sm:$0xff]
  %v474 = vld [vmem:[%s471 + $0x10] sm:$0xff]
  %v475 = vld [vmem:[%s471 + $0x18] sm:$0xff]
  %vm476 = vcmask 1043456
  %v477 = vrot.slane %v31, 4
  %v478 = vrot.slane %v32, 4
  %v479 = vsel %vm476, %v477, %v478
  %v480 = vrot.slane %v33, 4
  %v481 = vsel %vm476, %v478, %v480
  %v482 = vrot.slane %v34, 4
  %v483 = vsel %vm476, %v480, %v482
  %v484 = vrot.slane %v35, 4
  %v485 = vsel %vm476, %v482, %v484
  %v486 = vsel %vm60, %v479, 0
  %v488 = vsel %vm60, %v481, 0
  %v490 = vsel %vm60, %v483, 0
  %v492 = vsel %vm60, %v485, 0
  %494 = vmatprep.subr.mxu0 0.0
  %495 = vmatpush1.msra.mxu0 0.0
  %496 = vmatprep.subr.mxu0 0.0
  %497 = vmatpush1.msra.mxu0 0.0
  %498 = vmatprep.subr.mxu0 0.0
  %499 = vmatpush1.msra.mxu0 0.0
  %500 = vmatprep.subr.mxu0 0.0
  %501 = vmatpush1.msra.mxu0 0.0
  %502 = vmatprep.subr.mxu0 0.0
  %503 = vmatpush1.msra.mxu0 0.0
  %504 = vmatprep.subr.mxu0 0.0
  %505 = vmatpush1.msra.mxu0 0.0
  %506 = vmatprep.subr.mxu0 0.0
  %507 = vmatpush1.msra.mxu0 0.0
  %508 = vmatprep.subr.mxu0 0.0
  %509 = vmatpush1.msra.mxu0 0.0
  %510 = vmatprep.subr.mxu0 0.0
  %511 = vmatpush1.msra.mxu0 0.0
  %512 = vmatprep.subr.mxu0 0.0
  %513 = vmatpush1.msra.mxu0 0.0
  %514 = vmatprep.subr.mxu0 0.0
  %515 = vmatpush1.msra.mxu0 0.0
  %516 = vmatprep.subr.mxu0 0.0
  %517 = vmatpush1.msra.mxu0 0.0
  %518 = vmatprep.subr.mxu0 0.0
  %519 = vmatpush1.msra.mxu0 %v475
  %520 = vmatprep.subr.mxu0 0.0
  %521 = vmatpush1.msra.mxu0 %v474
  %522 = vmatprep.subr.mxu0 0.0
  %523 = vmatpush1.msra.mxu0 %v473
  %524 = vmatprep.subr.mxu0 0.0
  %525 = vmatpush1.msra.mxu0 %v472
  %526 = vmatprep.subr.mxu0 0.0
  %527 = vmatpush2.msra.mxu0 0.0
  %528 = vmatprep.subr.mxu0 0.0
  %529 = vmatpush2.msra.mxu0 0.0
  %530 = vmatprep.subr.mxu0 0.0
  %531 = vmatpush2.msra.mxu0 0.0
  %532 = vmatprep.subr.mxu0 0.0
  %533 = vmatpush2.msra.mxu0 0.0
  %534 = vmatprep.subr.mxu0 0.0
  %535 = vmatpush2.msra.mxu0 0.0
  %536 = vmatprep.subr.mxu0 0.0
  %537 = vmatpush2.msra.mxu0 0.0
  %538 = vmatprep.subr.mxu0 0.0
  %539 = vmatpush2.msra.mxu0 0.0
  %540 = vmatprep.subr.mxu0 0.0
  %541 = vmatpush2.msra.mxu0 0.0
  %542 = vmatprep.subr.mxu0 0.0
  %543 = vmatpush2.msra.mxu0 0.0
  %544 = vmatprep.subr.mxu0 0.0
  %545 = vmatpush2.msra.mxu0 0.0
  %546 = vmatprep.subr.mxu0 0.0
  %547 = vmatpush2.msra.mxu0 0.0
  %548 = vmatprep.subr.mxu0 0.0
  %549 = vmatpush2.msra.mxu0 0.0
  %550 = vmatprep.subr.mxu0 0.0
  %551 = vmatpush2.msra.mxu0 0.0
  %552 = vmatprep.subr.mxu0 0.0
  %553 = vmatpush2.msra.mxu0 0.0
  %554 = vmatprep.subr.mxu0 0.0
  %555 = vmatpush2.msra.mxu0 0.0
  %556 = vmatprep.subr.mxu0 0.0
  %557 = vmatpush2.msra.mxu0 0.0
  %558 = vmatprep.mubr.f32.mxu0 0.0
  %559 = vmatmul.mubr.f32.gmra.mxu0 %v486
  %v560 = vpop.f32.mrf.mxu0
  %v561 = vadd.f32 0.0, %v560
  %v562 = vpop.f32.mrf.mxu0
  %563 = vmatprep.mubr.f32.mxu0 0.0
  %564 = vmatmul.mubr.f32.gmra.mxu0 %v488
  %v565 = vpop.f32.mrf.mxu0
  %v566 = vadd.f32 0.0, %v565
  %v567 = vpop.f32.mrf.mxu0
  %568 = vmatprep.mubr.f32.mxu0 0.0
  %569 = vmatmul.mubr.f32.gmra.mxu0 %v490
  %v570 = vpop.f32.mrf.mxu0
  %v571 = vadd.f32 0.0, %v570
  %v572 = vpop.f32.mrf.mxu0
  %573 = vmatprep.mubr.f32.mxu0 0.0
  %574 = vmatmul.mubr.f32.gmra.mxu0 %v492
  %v575 = vpop.f32.mrf.mxu0
  %v576 = vadd.f32 0.0, %v575
  %v577 = vpop.f32.mrf.mxu0
  %578 = vdwg.mxu0
  %v579 = vadd.f32 %v467, %v561
  %v580 = vadd.f32 %v468, %v566
  %v581 = vadd.f32 %v469, %v571
  %v582 = vadd.f32 %v470, %v576
  %v583 = vld [vmem:[%s2] sm:$0x1]
  %v585 = vlaneseq
  %v586 = vshrl.u32 %v585, 7
  %v587 = vsub.s32 0, %v586
  %v588 = vrot.slane %v583, %v587
  %v590 = vadd.f32 %v579, %v588
  %v591 = vadd.f32 %v580, %v588
  %v592 = vadd.f32 %v581, %v588
  %v593 = vadd.f32 %v582, %v588
  %v594 = vmax.f32 %v590, 0.0
  %v595 = vmax.f32 %v591, 0.0
  %v596 = vmax.f32 %v592, 0.0
  %v597 = vmax.f32 %v593, 0.0
  %v598 = vld [vmem:[%s3] sm:$0xff]
  %v599 = vld [vmem:[%s3 + $0x8] sm:$0xff]
  %v600 = vld [vmem:[%s3 + $0x10] sm:$0xff]
  %v601 = vld [vmem:[%s3 + $0x18] sm:$0xff]
  %v602 = vmul.f32 %v594, %v598
  %v603 = vmul.f32 %v595, %v599
  %v604 = vmul.f32 %v596, %v600
  %v605 = vmul.f32 %v597, %v601
  %vm606 = vcmask 392192
  %v607 = vsel %vm606, %v602, -inf
  %vm608 = vcmask 390144
  %v609 = vsel %vm608, %v603, -inf
  %v610 = vmax.f32 %v607, %v609
  %v611 = vrot.slane %v610, 4
  %v612 = vmax.f32 %v610, %v611
  %v613 = vrot.slane %v612, 2
  %v614 = vmax.f32 %v612, %v613
  %v615 = vrot.slane %v614, 1
  %v616 = vmax.f32 %v614, %v615
  %vm617 = vcmask 392194
  %v618 = vsel %vm617, %v604, -inf
  %v619 = vsel %vm606, %v605, -inf
  %v620 = vmax.f32 %v618, %v619
  %v621 = vrot.slane %v620, 4
  %v622 = vmax.f32 %v620, %v621
  %v623 = vrot.slane %v622, 2
  %v624 = vmax.f32 %v622, %v623
  %v625 = vrot.slane %v624, 1
  %v626 = vmax.f32 %v624, %v625
  %vm627 = vcmask 1040384
  %v628 = vsel %vm627, %v616, %v626
  %v629 = vld [vmem:[%s4] sm:$0xff]
  %v630 = vld [vmem:[%s4 + $0x8] sm:$0xff]
  %v631 = vld [vmem:[%s4 + $0x10] sm:$0xff]
  %v632 = vld [vmem:[%s4 + $0x18] sm:$0xff]
  %v633 = vld [vmem:[%s4 + $0x20] sm:$0xff]
  %v634 = vld [vmem:[%s4 + $0x28] sm:$0xff]
  %v635 = vld [vmem:[%s5] sm:$0x1]
  %v637 = vlaneseq
  %v638 = vshrl.u32 %v637, 7
  %v639 = vsub.s32 0, %v638
  %v640 = vrot.slane %v635, %v639
  %v643 = vsel %vm606, %v628, 0
  %645 = vmatprep.subr.mxu0 0.0
  %646 = vmatpush1.msra.mxu0 0.0
  %647 = vmatprep.subr.mxu0 0.0
  %648 = vmatpush1.msra.mxu0 0.0
  %649 = vmatprep.subr.mxu0 0.0
  %650 = vmatpush1.msra.mxu0 0.0
  %651 = vmatprep.subr.mxu0 0.0
  %652 = vmatpush1.msra.mxu0 0.0
  %653 = vmatprep.subr.mxu0 0.0
  %654 = vmatpush1.msra.mxu0 0.0
  %655 = vmatprep.subr.mxu0 0.0
  %656 = vmatpush1.msra.mxu0 0.0
  %657 = vmatprep.subr.mxu0 0.0
  %658 = vmatpush1.msra.mxu0 0.0
  %659 = vmatprep.subr.mxu0 0.0
  %660 = vmatpush1.msra.mxu0 0.0
  %661 = vmatprep.subr.mxu0 0.0
  %662 = vmatpush1.msra.mxu0 0.0
  %663 = vmatprep.subr.mxu0 0.0
  %664 = vmatpush1.msra.mxu0 0.0
  %665 = vmatprep.subr.mxu0 0.0
  %666 = vmatpush1.msra.mxu0 %v634
  %667 = vmatprep.subr.mxu0 0.0
  %668 = vmatpush1.msra.mxu0 %v633
  %669 = vmatprep.subr.mxu0 0.0
  %670 = vmatpush1.msra.mxu0 %v632
  %671 = vmatprep.subr.mxu0 0.0
  %672 = vmatpush1.msra.mxu0 %v631
  %673 = vmatprep.subr.mxu0 0.0
  %674 = vmatpush1.msra.mxu0 %v630
  %675 = vmatprep.subr.mxu0 0.0
  %676 = vmatpush1.msra.mxu0 %v629
  %677 = vmatprep.subr.mxu0 0.0
  %678 = vmatpush2.msra.mxu0 0.0
  %679 = vmatprep.subr.mxu0 0.0
  %680 = vmatpush2.msra.mxu0 0.0
  %681 = vmatprep.subr.mxu0 0.0
  %682 = vmatpush2.msra.mxu0 0.0
  %683 = vmatprep.subr.mxu0 0.0
  %684 = vmatpush2.msra.mxu0 0.0
  %685 = vmatprep.subr.mxu0 0.0
  %686 = vmatpush2.msra.mxu0 0.0
  %687 = vmatprep.subr.mxu0 0.0
  %688 = vmatpush2.msra.mxu0 0.0
  %689 = vmatprep.subr.mxu0 0.0
  %690 = vmatpush2.msra.mxu0 0.0
  %691 = vmatprep.subr.mxu0 0.0
  %692 = vmatpush2.msra.mxu0 0.0
  %693 = vmatprep.subr.mxu0 0.0
  %694 = vmatpush2.msra.mxu0 0.0
  %695 = vmatprep.subr.mxu0 0.0
  %696 = vmatpush2.msra.mxu0 0.0
  %697 = vmatprep.subr.mxu0 0.0
  %698 = vmatpush2.msra.mxu0 0.0
  %699 = vmatprep.subr.mxu0 0.0
  %700 = vmatpush2.msra.mxu0 0.0
  %701 = vmatprep.subr.mxu0 0.0
  %702 = vmatpush2.msra.mxu0 0.0
  %703 = vmatprep.subr.mxu0 0.0
  %704 = vmatpush2.msra.mxu0 0.0
  %705 = vmatprep.subr.mxu0 0.0
  %706 = vmatpush2.msra.mxu0 0.0
  %707 = vmatprep.subr.mxu0 0.0
  %708 = vmatpush2.msra.mxu0 0.0
  %709 = vmatprep.mubr.f32.mxu0 0.0
  %710 = vmatmul.mubr.f32.gmra.mxu0 %v643
  %v711 = vpop.f32.mrf.mxu0
  %v712 = vadd.f32 %v640, %v711
  %v713 = vpop.f32.mrf.mxu0
  %714 = vdwg.mxu0
  %v715 = vmax.f32 %v712, 0.0
  %v716 = vld [vmem:[%s6] sm:$0xff]
  %v717 = vld [vmem:[%s6 + $0x8] sm:$0xff]
  %v718 = vld [vmem:[%s6 + $0x10] sm:$0xff]
  %v719 = vld [vmem:[%s6 + $0x18] sm:$0xff]
  %v720 = vld [vmem:[#allocation2] sm:$0x1]
  %v722 = vlaneseq
  %v723 = vshrl.u32 %v722, 7
  %v724 = vsub.s32 0, %v723
  %v725 = vrot.slane %v720, %v724
  %v728 = vsel %vm60, %v715, 0
  %730 = vmatprep.subr.mxu0 0.0
  %731 = vmatpush1.msra.mxu0 0.0
  %732 = vmatprep.subr.mxu0 0.0
  %733 = vmatpush1.msra.mxu0 0.0
  %734 = vmatprep.subr.mxu0 0.0
  %735 = vmatpush1.msra.mxu0 0.0
  %736 = vmatprep.subr.mxu0 0.0
  %737 = vmatpush1.msra.mxu0 0.0
  %738 = vmatprep.subr.mxu0 0.0
  %739 = vmatpush1.msra.mxu0 0.0
  %740 = vmatprep.subr.mxu0 0.0
  %741 = vmatpush1.msra.mxu0 0.0
  %742 = vmatprep.subr.mxu0 0.0
  %743 = vmatpush1.msra.mxu0 0.0
  %744 = vmatprep.subr.mxu0 0.0
  %745 = vmatpush1.msra.mxu0 0.0
  %746 = vmatprep.subr.mxu0 0.0
  %747 = vmatpush1.msra.mxu0 0.0
  %748 = vmatprep.subr.mxu0 0.0
  %749 = vmatpush1.msra.mxu0 0.0
  %750 = vmatprep.subr.mxu0 0.0
  %751 = vmatpush1.msra.mxu0 0.0
  %752 = vmatprep.subr.mxu0 0.0
  %753 = vmatpush1.msra.mxu0 0.0
  %754 = vmatprep.subr.mxu0 0.0
  %755 = vmatpush1.msra.mxu0 %v719
  %756 = vmatprep.subr.mxu0 0.0
  %757 = vmatpush1.msra.mxu0 %v718
  %758 = vmatprep.subr.mxu0 0.0
  %759 = vmatpush1.msra.mxu0 %v717
  %760 = vmatprep.subr.mxu0 0.0
  %761 = vmatpush1.msra.mxu0 %v716
  %762 = vmatprep.subr.mxu0 0.0
  %763 = vmatpush2.msra.mxu0 0.0
  %764 = vmatprep.subr.mxu0 0.0
  %765 = vmatpush2.msra.mxu0 0.0
  %766 = vmatprep.subr.mxu0 0.0
  %767 = vmatpush2.msra.mxu0 0.0
  %768 = vmatprep.subr.mxu0 0.0
  %769 = vmatpush2.msra.mxu0 0.0
  %770 = vmatprep.subr.mxu0 0.0
  %771 = vmatpush2.msra.mxu0 0.0
  %772 = vmatprep.subr.mxu0 0.0
  %773 = vmatpush2.msra.mxu0 0.0
  %774 = vmatprep.subr.mxu0 0.0
  %775 = vmatpush2.msra.mxu0 0.0
  %776 = vmatprep.subr.mxu0 0.0
  %777 = vmatpush2.msra.mxu0 0.0
  %778 = vmatprep.subr.mxu0 0.0
  %779 = vmatpush2.msra.mxu0 0.0
  %780 = vmatprep.subr.mxu0 0.0
  %781 = vmatpush2.msra.mxu0 0.0
  %782 = vmatprep.subr.mxu0 0.0
  %783 = vmatpush2.msra.mxu0 0.0
  %784 = vmatprep.subr.mxu0 0.0
  %785 = vmatpush2.msra.mxu0 0.0
  %786 = vmatprep.subr.mxu0 0.0
  %787 = vmatpush2.msra.mxu0 0.0
  %788 = vmatprep.subr.mxu0 0.0
  %789 = vmatpush2.msra.mxu0 0.0
  %790 = vmatprep.subr.mxu0 0.0
  %791 = vmatpush2.msra.mxu0 0.0
  %792 = vmatprep.subr.mxu0 0.0
  %793 = vmatpush2.msra.mxu0 0.0
  %794 = vmatprep.mubr.f32.mxu0 0.0
  %795 = vmatmul.mubr.f32.gmra.mxu0 %v728
  %v796 = vpop.f32.mrf.mxu0
  %v797 = vadd.f32 %v725, %v796
  %v798 = vpop.f32.mrf.mxu0
  %799 = vdwg.mxu0
  %v800 = vsub.f32 0.0, %v797
  %v801 = vmul.f32 %v800, 1.442695
  %v802 = vpow.pop %v801
  %v803 = vadd.f32 %v802, 1.0
  %v804 = vrcp.pop %v803
  %v805 = vmul.f32 1.0, %v804
  %vm806 = vcmask 1024
  %807 = vst.msk [vmem:[%s8] sm:$0x3] %vm806, %v805
  // Predicated region
  $region34: #{conv_critic_forward.1} parent=0 // pred_check
    _
  $region35: #{conv_critic_forward.1} parent=0 // pred_check_branch
    %809 = sbr.rel (0) target = $region37
  $region36: #{conv_critic_forward.1} parent=0 // pred_region
    _
  $region37: #{conv_critic_forward.1} parent=0 // pred_fallthru
    _
  // Predicated region
  $region38: #{conv_critic_forward.1} parent=0 // pred_check
    _
  $region39: #{conv_critic_forward.1} parent=0 // pred_check_branch
    %811 = sbr.rel (0) target = $region41
  $region40: #{conv_critic_forward.1} parent=0 // pred_region
    _
  $region41: #{conv_critic_forward.1} parent=0 // pred_fallthru
    _

</llo_original>
